<compile_context>
chip_gen: v7x
topology: tpu7x:2x2x1
jax: 0.10.0
libtpu: 0.0.40
codegen_flags: <defaults>
</compile_context>

<pallas_src>
import math
import functools

import jax
import jax.numpy as jnp
from jax import lax
from jax.experimental import pallas as pl
from jax.experimental.pallas import tpu as pltpu


def _pick_vmem_limit_bytes():
    """Per-generation scoped-VMEM budget with headroom.

    ~96 MiB on v5e/v6e (128 MiB physical VMEM), ~48 MiB on v7x (64 MiB / TC).
    Falls back to 64 MiB if the hardware query is unavailable.
    """
    try:
        phys = int(pltpu.get_tpu_info().vmem_capacity_bytes)
        return min(phys * 3 // 4, 100 * 1024 * 1024)
    except Exception:
        return 64 * 1024 * 1024


_VMEM_LIMIT_BYTES = _pick_vmem_limit_bytes()


# ---------------------------------------------------------------------------
# Kernel 1: fused QKV projection (single full-width matmul per tile).
# ---------------------------------------------------------------------------
def _qkv_proj_kernel(x_ref, w_ref, b_ref, q_ref, kv_ref, *, num_heads, head_dim):
    """One (batch, seq-tile) grid step.

    x_ref : (1, bt, D)         activation tile
    w_ref : (D, 3D)            resident weight (constant index_map; Q columns pre-scaled)
    b_ref : (1, 3D)            bias (Q part pre-scaled)
    q_ref : (1, H, bt, hd)     per-head (pre-scaled) Q
    kv_ref: (2, 1, H, bt, hd)  [0] = K, [1] = V  (becomes `present`)
    """
    d = num_heads * head_dim
    # One full-width (bt, D) @ (D, 3D) MXU matmul, f32 accumulation.
    qkv = jnp.dot(x_ref[0], w_ref[...],
                  preferred_element_type=jnp.float32) + b_ref[...]
    # Per-head slice stores.  For head_dim % 128 == 0 these are lane-aligned;
    # for smaller head_dim they involve lane relayout / masked stores
    # (required by the module's per-head `present` layout).
    for h in range(num_heads):
        lo = h * head_dim
        q_ref[0, h] = qkv[:, lo:lo + head_dim].astype(q_ref.dtype)
        kv_ref[0, 0, h] = qkv[:, d + lo:d + lo + head_dim].astype(kv_ref.dtype)
        kv_ref[1, 0, h] = qkv[:, 2 * d + lo:2 * d + lo + head_dim].astype(kv_ref.dtype)


def qkv_projection(x, w_qkv, b_qkv, *, num_heads, block_t):
    B, T, D = x.shape
    hd = D // num_heads
    assert D % num_heads == 0
    assert T % block_t == 0

    b2d = b_qkv.reshape(1, 3 * D)

    kernel = functools.partial(_qkv_proj_kernel,
                               num_heads=num_heads, head_dim=hd)

    q, kv = pl.pallas_call(
        kernel,
        out_shape=(
            jax.ShapeDtypeStruct((B, num_heads, T, hd), x.dtype),
            jax.ShapeDtypeStruct((2, B, num_heads, T, hd), x.dtype),
        ),
        grid_spec=pltpu.PrefetchScalarGridSpec(
            num_scalar_prefetch=0,
            grid=(B, T // block_t),
            in_specs=[
                pl.BlockSpec((1, block_t, D), lambda b, ti: (b, ti, 0)),
                # Constant index map -> weight fetched once, resident in VMEM.
                pl.BlockSpec((D, 3 * D), lambda b, ti: (0, 0)),
                pl.BlockSpec((1, 3 * D), lambda b, ti: (0, 0)),
            ],
            out_specs=[
                pl.BlockSpec((1, num_heads, block_t, hd),
                             lambda b, ti: (b, 0, ti, 0)),
                pl.BlockSpec((2, 1, num_heads, block_t, hd),
                             lambda b, ti: (0, b, 0, ti, 0)),
            ],
        ),
        compiler_params=pltpu.CompilerParams(
            dimension_semantics=("parallel", "parallel"),
            vmem_limit_bytes=_VMEM_LIMIT_BYTES),
    )(x, w_qkv, b2d)
    return q, kv


# ---------------------------------------------------------------------------
# Kernel 2: causal flash attention, all heads batched per grid step.
# ---------------------------------------------------------------------------
def _flash_attn_kernel(q_ref, kv_ref, o_ref, m_scr, l_scr, acc_scr, *,
                       num_heads, head_dim, block_q, block_k, exp_dtype):
    """Grid (B, T/block_q, T/block_k), kv axis innermost ("arbitrary").

    q_ref  : (1, H, bq, hd)      Q is already scaled by 1/sqrt(hd)
    kv_ref : (2, 1, H, bk, hd)   [0] = K, [1] = V
    o_ref  : (1, bq, D)          lane-dense output block
    m/l    : (H, bq, 1) f32      online-softmax statistics
    acc    : (H, bq, hd) f32     output accumulator
    """
    qi = pl.program_id(1)
    ki = pl.program_id(2)
    nk = pl.num_programs(2)

    q_start = qi * block_q
    k_start = ki * block_k

    @pl.when(ki == 0)
    def _init():
        m_scr[...] = jnp.full(m_scr.shape, -jnp.inf, dtype=m_scr.dtype)
        l_scr[...] = jnp.zeros_like(l_scr)
        acc_scr[...] = jnp.zeros_like(acc_scr)

    def scores():
        # Batched over heads; contract the last dims -> no explicit K transpose.
        return jnp.einsum('hqd,hkd->hqk', q_ref[0], kv_ref[0, 0],
                          preferred_element_type=jnp.float32)

    def accumulate(s):
        v = kv_ref[1, 0]
        m_prev = m_scr[...]
        m_new = jnp.maximum(m_prev, jnp.max(s, axis=-1, keepdims=True))
        alpha = jnp.exp(m_prev - m_new)
        if exp_dtype is not None:
            # bf16 EUP path (v6e/v7x); statistics/accumulation stay f32.
            p = jnp.exp((s - m_new).astype(exp_dtype))
            p_sum = jnp.sum(p.astype(jnp.float32), axis=-1, keepdims=True)
        else:
            p = jnp.exp(s - m_new)
            p_sum = jnp.sum(p, axis=-1, keepdims=True)
        l_scr[...] = alpha * l_scr[...] + p_sum
        acc_scr[...] = alpha * acc_scr[...] + jnp.einsum(
            'hqk,hkd->hqd', p.astype(v.dtype), v,
            preferred_element_type=jnp.float32)
        m_scr[...] = m_new

    # Causal tile classification (static block math on grid scalars):
    #   visible    : tile contributes at all (first key <= last query)
    #   needs_mask : tile straddles the diagonal (last key > first query)
    visible = k_start <= q_start + (block_q - 1)
    needs_mask = k_start + (block_k - 1) > q_start

    @pl.when(jnp.logical_and(visible, jnp.logical_not(needs_mask)))
    def _compute_full():
        accumulate(scores())            # unmasked fast path (majority of tiles)

    @pl.when(jnp.logical_and(visible, needs_mask))
    def _compute_masked():
        s = scores()
        rows = q_start + lax.broadcasted_iota(jnp.int32, (block_q, block_k), 0)
        cols = k_start + lax.broadcasted_iota(jnp.int32, (block_q, block_k), 1)
        accumulate(jnp.where((rows >= cols)[None, :, :], s, -jnp.inf))

    @pl.when(ki == nk - 1)
    def _finalize():
        inv_l = pl.reciprocal(l_scr[...], approx=True)      # EUP, finalize-only
        out_heads = acc_scr[...] * inv_l                    # (H, bq, hd) f32
        if head_dim % 128 == 0:
            # Lane-aligned direct stores into the (bq, D) output block.
            for h in range(num_heads):
                o_ref[0, :, h * head_dim:(h + 1) * head_dim] = (
                    out_heads[h].astype(o_ref.dtype))
        else:
            # hd < 128: single lane-dense store via concat (relayout accepted).
            o_ref[0] = jnp.concatenate(
                [out_heads[h] for h in range(num_heads)], axis=-1
            ).astype(o_ref.dtype)


def flash_attention(q, kv, *, block_q, block_k, exp_dtype=None):
    B, H, T, hd = q.shape
    D = H * hd
    assert T % block_q == 0 and T % block_k == 0

    # VMEM budget note (v7x especially): besides the declared scratch, the
    # compiler-managed s/p temporaries are H*block_q*block_k f32 each and the
    # m/l stats are lane-padded to 128.  Keep H*block_q*block_k modest.
    kernel = functools.partial(_flash_attn_kernel, num_heads=H, head_dim=hd,
                               block_q=block_q, block_k=block_k,
                               exp_dtype=exp_dtype)

    def kv_index_map(b, qi, ki):
        # Clamp ki to the last causally-visible key block for this query tile:
        # fully-masked tiles resolve to the same block index as the diagonal
        # tile, so Pallas issues no DMA for them (no wasted KV HBM traffic).
        last_visible = (qi * block_q + block_q - 1) // block_k
        return (0, b, 0, jnp.minimum(ki, last_visible), 0)

    return pl.pallas_call(
        kernel,
        out_shape=jax.ShapeDtypeStruct((B, T, D), q.dtype),
        grid_spec=pltpu.PrefetchScalarGridSpec(
            num_scalar_prefetch=0,
            grid=(B, T // block_q, T // block_k),
            in_specs=[
                pl.BlockSpec((1, H, block_q, hd),
                             lambda b, qi, ki: (b, 0, qi, 0)),
                pl.BlockSpec((2, 1, H, block_k, hd), kv_index_map),
            ],
            out_specs=pl.BlockSpec((1, block_q, D),
                                   lambda b, qi, ki: (b, qi, 0)),
            scratch_shapes=[
                pltpu.VMEM((H, block_q, 1), jnp.float32),   # running max m
                pltpu.VMEM((H, block_q, 1), jnp.float32),   # running denom l
                pltpu.VMEM((H, block_q, hd), jnp.float32),  # output accumulator
            ],
        ),
        compiler_params=pltpu.CompilerParams(
            dimension_semantics=("parallel", "parallel", "arbitrary"),
            vmem_limit_bytes=_VMEM_LIMIT_BYTES),
    )(q, kv)


# ---------------------------------------------------------------------------
# Public wrapper (matches the PyTorch module's forward, layer_past=None).
# ---------------------------------------------------------------------------
def self_attention(x, w_qkv, b_qkv, *, num_heads,
                   block_q=None, block_k=None, block_t=None,
                   softmax_exp_dtype=None):
    """x: (B, T, D).  w_qkv: (D, 3D) == torch Linear weight.T.  b_qkv: (3D,).

    Returns (attn_out (B, T, D), present (2B, H, T, D//H)) where `present`
    equals torch.cat([k, v], dim=0) of the per-head K/V tensors.

    softmax_exp_dtype: set to jnp.bfloat16 on v6e/v7x to run the softmax
    numerator exp in bf16 (leave None / f32 on v5e).
    """
    B, T, D = x.shape
    hd = D // num_heads
    # 256-sized tiles by default: per-step overhead amortized and KV HBM
    # traffic (~T^2/block_q) halved vs 128.  Override per chip / VMEM budget.
    if block_t is None:
        block_t = min(T, 256)
    if block_q is None:
        block_q = min(T, 256)
    if block_k is None:
        block_k = min(T, 256)

    # Fold the 1/sqrt(hd) attention scale into the Q columns of the QKV
    # weight/bias (one-time, zero extra passes); K/V (`present`) untouched.
    scale = 1.0 / math.sqrt(hd)
    col_scale = jnp.concatenate([
        jnp.full((D,), scale, dtype=w_qkv.dtype),
        jnp.ones((2 * D,), dtype=w_qkv.dtype),
    ])
    w_scaled = w_qkv * col_scale[None, :]
    b_scaled = b_qkv * col_scale.astype(b_qkv.dtype)

    q, kv = qkv_projection(x, w_scaled, b_scaled, num_heads=num_heads,
                           block_t=block_t)
    out = flash_attention(q, kv, block_q=block_q, block_k=block_k,
                          exp_dtype=softmax_exp_dtype)
    # torch.cat([k, v], dim=0) == free reshape of the (2, B, H, T, hd) output.
    present = kv.reshape(2 * B, num_heads, T, hd)
    return out, present


# ---------------------------------------------------------------------------
# Pure-JAX reference + test.
# ---------------------------------------------------------------------------
def _reference(x, w_qkv, b_qkv, num_heads):
    B, T, D = x.shape
    hd = D // num_heads
    qkv = x @ w_qkv + b_qkv                                  # (B, T, 3D)
    qkv = qkv.reshape(B, T, 3, num_heads, hd).transpose(2, 0, 3, 1, 4)
    q, k, v = qkv[0], qkv[1], qkv[2]
    present = jnp.concatenate([k, v], axis=0)
    attn = (q @ jnp.swapaxes(k, -2, -1)) * (1.0 / math.sqrt(hd))
    mask = jnp.tril(jnp.ones((T, T), dtype=bool))
    attn = jnp.where(mask[None, None], attn, -jnp.inf)
    attn = jax.nn.softmax(attn, axis=-1)
    out = attn @ v                                           # (B, H, T, hd)
    out = jnp.transpose(out, (0, 2, 1, 3)).reshape(B, T, D)
    return out, present


def _run_case(B, T, D, H, block=None):
    key = jax.random.PRNGKey(0)
    kx, kw, kb = jax.random.split(key, 3)
    x = jax.random.normal(kx, (B, T, D), dtype=jnp.float32)
    # torch nn.Linear(D, 3D).weight is (3D, D); we take its transpose for x @ W.
    w_qkv = jax.random.normal(kw, (D, 3 * D), dtype=jnp.float32) * 0.02
    b_qkv = jax.random.normal(kb, (3 * D,), dtype=jnp.float32) * 0.02

    kwargs = {}
    if block is not None:
        kwargs = dict(block_q=block, block_k=block, block_t=block)
    out, present = self_attention(x, w_qkv, b_qkv, num_heads=H, **kwargs)
    jax.block_until_ready((out, present))

    ref_out, ref_present = _reference(x, w_qkv, b_qkv, H)
    assert out.shape == (B, T, D)
    assert present.shape == (2 * B, H, T, D // H)
    # Output tolerance accounts for the approx (EUP) reciprocal in the softmax.
    assert jnp.allclose(out, ref_out, atol=2e-3, rtol=2e-3), \
        float(jnp.max(jnp.abs(out - ref_out)))
    assert jnp.allclose(present, ref_present, atol=1e-4, rtol=1e-4), \
        float(jnp.max(jnp.abs(present - ref_present)))


if __name__ == "__main__":
    # Case 1: head_dim = 128 (lane-aligned direct-store path).  8x8 blocks
    # give a 2x2 tile grid per sample, exercising the online softmax, the
    # straddle-mask branch and the clamped-DMA causal tile skip.
    _run_case(B=2, T=16, D=256, H=2, block=8)
    # Case 2: head_dim = 64 with default (single-tile) blocks, exercising the
    # lane-masked per-head slice stores in the QKV kernel and the concat
    # finalize path.
    _run_case(B=2, T=16, D=256, H=4, block=None)
    print("KERNEL_OK")
</pallas_src>

<mosaic_0001>
module attributes {stable_mosaic.version = 11 : i64} {
  func.func @_qkv_proj_kernel(%arg0: i32, %arg1: i32, %arg2: memref<1x8x256xf32, #tpu.memory_space<vmem>>, %arg3: memref<256x768xf32, #tpu.memory_space<vmem>>, %arg4: memref<1x768xf32, #tpu.memory_space<vmem>>, %arg5: memref<1x2x8x128xf32, #tpu.memory_space<vmem>>, %arg6: memref<2x1x2x8x128xf32, #tpu.memory_space<vmem>>) attributes {dimension_semantics = [#tpu.dimension_semantics<parallel>, #tpu.dimension_semantics<parallel>], iteration_bounds = array<i64: 2, 2>, scalar_prefetch = 0 : i64, scratch_operands = 0 : i64, tpu.core_type = #tpu.core_type<tc>, window_params = [{transform_indices = @transform_0, window_bounds = array<i64: 1, 8, 256>}, {pipeline_mode = #tpu.pipeline_mode<synchronous>, transform_indices = @transform_1, window_bounds = array<i64: 256, 768>}, {pipeline_mode = #tpu.pipeline_mode<synchronous>, transform_indices = @transform_2, window_bounds = array<i64: 1, 768>}, {transform_indices = @transform_3, window_bounds = array<i64: 1, 2, 8, 128>}, {transform_indices = @transform_4, window_bounds = array<i64: 2, 1, 2, 8, 128>}]} {
    %c0 = arith.constant 0 : index
    %c0_0 = arith.constant 0 : index
    %c0_1 = arith.constant 0 : index
    %0 = vector.load %arg2[%c0, %c0_0, %c0_1] : memref<1x8x256xf32, #tpu.memory_space<vmem>>, vector<1x8x256xf32>
    %1 = vector.shape_cast %0 : vector<1x8x256xf32> to vector<8x256xf32>
    %c0_2 = arith.constant 0 : index
    %c0_3 = arith.constant 0 : index
    %2 = vector.load %arg3[%c0_2, %c0_3] : memref<256x768xf32, #tpu.memory_space<vmem>>, vector<256x768xf32>
    %cst = arith.constant dense<0.000000e+00> : vector<8x768xf32>
    %3 = tpu.matmul %1, %2, %cst {dimension_numbers = #tpu.dot_dimension_numbers<[1], [0], [0], [1], [0, 0, 1, 1], [], []>} : vector<8x256xf32>, vector<256x768xf32>, vector<8x768xf32> -> vector<8x768xf32>
    %c0_4 = arith.constant 0 : index
    %c0_5 = arith.constant 0 : index
    %4 = vector.load %arg4[%c0_4, %c0_5] : memref<1x768xf32, #tpu.memory_space<vmem>>, vector<1x768xf32>
    %5 = vector.broadcast %4 : vector<1x768xf32> to vector<8x768xf32>
    %6 = arith.addf %3, %5 : vector<8x768xf32>
    %7 = vector.extract_strided_slice %6 {offsets = [0, 0], sizes = [8, 128], strides = [1, 1]} : vector<8x768xf32> to vector<8x128xf32>
    %c0_6 = arith.constant 0 : index
    %c0_7 = arith.constant 0 : index
    %c0_8 = arith.constant 0 : index
    %c0_9 = arith.constant 0 : index
    %8 = vector.load %arg5[%c0_6, %c0_7, %c0_8, %c0_9] : memref<1x2x8x128xf32, #tpu.memory_space<vmem>>, vector<1x1x8x128xf32>
    %9 = vector.shape_cast %8 : vector<1x1x8x128xf32> to vector<8x128xf32>
    %10 = vector.shape_cast %7 : vector<8x128xf32> to vector<1x1x8x128xf32>
    tpu.vector_store %arg5[%c0_6, %c0_7, %c0_8, %c0_9], %10 {strides = array<i32>} : memref<1x2x8x128xf32, #tpu.memory_space<vmem>>, vector<1x1x8x128xf32>,
    %11 = vector.extract_strided_slice %6 {offsets = [0, 256], sizes = [8, 128], strides = [1, 1]} : vector<8x768xf32> to vector<8x128xf32>
    %c0_10 = arith.constant 0 : index
    %c0_11 = arith.constant 0 : index
    %c0_12 = arith.constant 0 : index
    %c0_13 = arith.constant 0 : index
    %c0_14 = arith.constant 0 : index
    %12 = vector.load %arg6[%c0_10, %c0_11, %c0_12, %c0_13, %c0_14] : memref<2x1x2x8x128xf32, #tpu.memory_space<vmem>>, vector<1x1x1x8x128xf32>
    %13 = vector.shape_cast %12 : vector<1x1x1x8x128xf32> to vector<8x128xf32>
    %14 = vector.shape_cast %11 : vector<8x128xf32> to vector<1x1x1x8x128xf32>
    tpu.vector_store %arg6[%c0_10, %c0_11, %c0_12, %c0_13, %c0_14], %14 {strides = array<i32>} : memref<2x1x2x8x128xf32, #tpu.memory_space<vmem>>, vector<1x1x1x8x128xf32>,
    %15 = vector.extract_strided_slice %6 {offsets = [0, 512], sizes = [8, 128], strides = [1, 1]} : vector<8x768xf32> to vector<8x128xf32>
    %c1 = arith.constant 1 : index
    %c0_15 = arith.constant 0 : index
    %c0_16 = arith.constant 0 : index
    %c0_17 = arith.constant 0 : index
    %c0_18 = arith.constant 0 : index
    %16 = vector.load %arg6[%c1, %c0_15, %c0_16, %c0_17, %c0_18] : memref<2x1x2x8x128xf32, #tpu.memory_space<vmem>>, vector<1x1x1x8x128xf32>
    %17 = vector.shape_cast %16 : vector<1x1x1x8x128xf32> to vector<8x128xf32>
    %18 = vector.shape_cast %15 : vector<8x128xf32> to vector<1x1x1x8x128xf32>
    tpu.vector_store %arg6[%c1, %c0_15, %c0_16, %c0_17, %c0_18], %18 {strides = array<i32>} : memref<2x1x2x8x128xf32, #tpu.memory_space<vmem>>, vector<1x1x1x8x128xf32>,
    %19 = vector.extract_strided_slice %6 {offsets = [0, 128], sizes = [8, 128], strides = [1, 1]} : vector<8x768xf32> to vector<8x128xf32>
    %c0_19 = arith.constant 0 : index
    %c1_20 = arith.constant 1 : index
    %c0_21 = arith.constant 0 : index
    %c0_22 = arith.constant 0 : index
    %20 = vector.load %arg5[%c0_19, %c1_20, %c0_21, %c0_22] : memref<1x2x8x128xf32, #tpu.memory_space<vmem>>, vector<1x1x8x128xf32>
    %21 = vector.shape_cast %20 : vector<1x1x8x128xf32> to vector<8x128xf32>
    %22 = vector.shape_cast %19 : vector<8x128xf32> to vector<1x1x8x128xf32>
    tpu.vector_store %arg5[%c0_19, %c1_20, %c0_21, %c0_22], %22 {strides = array<i32>} : memref<1x2x8x128xf32, #tpu.memory_space<vmem>>, vector<1x1x8x128xf32>,
    %23 = vector.extract_strided_slice %6 {offsets = [0, 384], sizes = [8, 128], strides = [1, 1]} : vector<8x768xf32> to vector<8x128xf32>
    %c0_23 = arith.constant 0 : index
    %c0_24 = arith.constant 0 : index
    %c1_25 = arith.constant 1 : index
    %c0_26 = arith.constant 0 : index
    %c0_27 = arith.constant 0 : index
    %24 = vector.load %arg6[%c0_23, %c0_24, %c1_25, %c0_26, %c0_27] : memref<2x1x2x8x128xf32, #tpu.memory_space<vmem>>, vector<1x1x1x8x128xf32>
    %25 = vector.shape_cast %24 : vector<1x1x1x8x128xf32> to vector<8x128xf32>
    %26 = vector.shape_cast %23 : vector<8x128xf32> to vector<1x1x1x8x128xf32>
    tpu.vector_store %arg6[%c0_23, %c0_24, %c1_25, %c0_26, %c0_27], %26 {strides = array<i32>} : memref<2x1x2x8x128xf32, #tpu.memory_space<vmem>>, vector<1x1x1x8x128xf32>,
    %27 = vector.extract_strided_slice %6 {offsets = [0, 640], sizes = [8, 128], strides = [1, 1]} : vector<8x768xf32> to vector<8x128xf32>
    %c1_28 = arith.constant 1 : index
    %c0_29 = arith.constant 0 : index
    %c1_30 = arith.constant 1 : index
    %c0_31 = arith.constant 0 : index
    %c0_32 = arith.constant 0 : index
    %28 = vector.load %arg6[%c1_28, %c0_29, %c1_30, %c0_31, %c0_32] : memref<2x1x2x8x128xf32, #tpu.memory_space<vmem>>, vector<1x1x1x8x128xf32>
    %29 = vector.shape_cast %28 : vector<1x1x1x8x128xf32> to vector<8x128xf32>
    %30 = vector.shape_cast %27 : vector<8x128xf32> to vector<1x1x1x8x128xf32>
    tpu.vector_store %arg6[%c1_28, %c0_29, %c1_30, %c0_31, %c0_32], %30 {strides = array<i32>} : memref<2x1x2x8x128xf32, #tpu.memory_space<vmem>>, vector<1x1x1x8x128xf32>,
    return
  }
  func.func @transform_0(%arg0: i32, %arg1: i32) -> (i32, i32, i32) {
    %c0_i32 = arith.constant 0 : i32
    %c0_i32_0 = arith.constant 0 : i32
    return %arg0, %arg1, %c0_i32 : i32, i32, i32
  }
  func.func @transform_1(%arg0: i32, %arg1: i32) -> (i32, i32) {
    %c0_i32 = arith.constant 0 : i32
    %c0_i32_0 = arith.constant 0 : i32
    %c0_i32_1 = arith.constant 0 : i32
    return %c0_i32, %c0_i32_0 : i32, i32
  }
  func.func @transform_2(%arg0: i32, %arg1: i32) -> (i32, i32) {
    %c0_i32 = arith.constant 0 : i32
    %c0_i32_0 = arith.constant 0 : i32
    %c0_i32_1 = arith.constant 0 : i32
    return %c0_i32, %c0_i32_0 : i32, i32
  }
  func.func @transform_3(%arg0: i32, %arg1: i32) -> (i32, i32, i32, i32) {
    %c0_i32 = arith.constant 0 : i32
    %c0_i32_0 = arith.constant 0 : i32
    %c0_i32_1 = arith.constant 0 : i32
    return %arg0, %c0_i32, %arg1, %c0_i32_0 : i32, i32, i32, i32
  }
  func.func @transform_4(%arg0: i32, %arg1: i32) -> (i32, i32, i32, i32, i32) {
    %c0_i32 = arith.constant 0 : i32
    %c0_i32_0 = arith.constant 0 : i32
    %c0_i32_1 = arith.constant 0 : i32
    %c0_i32_2 = arith.constant 0 : i32
    return %c0_i32, %arg0, %c0_i32_0, %arg1, %c0_i32_1 : i32, i32, i32, i32, i32
  }
}

</mosaic_0001>

<llo_original>
// kernel: tpu_custom_call.1
$region0: #{tpu_custom_call.1}
  #allocation0 [shape = 'u32[]', space=smem, size = 0x4, offset = 0x4, fixed_abs, tag = 'smem constant byte address 0x4 - core index']
  #allocation1 [shape = 'u32[144,128]{1,0:T(1,128)}', space=vmem, size = 0x12000, scoped, tag = 'internal scratch']
  #allocation11 [shape = 's32[]', space=sflag, size = 0x4, offset = 0, fixed_abs, tag = 'sflag constant byte address 0x0 - dummy sync flag']
  %s0 = inlined_call_operand.hbm [shape: f32[2,16,256], index: 0, kind: input, shape index: {}]
  %s1 = inlined_call_operand.hbm [shape: f32[256,768], index: 1, kind: input, shape index: {}]
  %s2 = inlined_call_operand.hbm [shape: f32[1,768], index: 2, kind: input, shape index: {}]
  %s3 = inlined_call_operand.hbm [shape: f32[2,2,16,128], index: 3, kind: output, shape index: {0}]
  %s4 = inlined_call_operand.hbm [shape: f32[2,2,2,16,128], index: 4, kind: output, shape index: {1}]
  %5 = xla_tuple %s3, %s4
  %s6 = sld [smem:[#allocation0]]
  $region65: #{tpu_custom_call.1} parent=0
    _
  %s8 = ssub.s32 1, %s6
  %s9 = scalar_select 0, %s8, %s6
  $region1: #{tpu_custom_call.1} parent=0
    #allocation2 [shape = 'u8[16384]{0}', space=vmem, size = 0x4000, scoped, tag = 'input window, operand 0']
    #allocation3 [shape = 's32[2]{0}', space=sflag, size = 0x8, scoped, tag = 'scoped memory for tpu_custom_call.1']
    #allocation4 [shape = 's32[2]{0}', space=sflag, size = 0x8, scoped, tag = 'scoped memory for tpu_custom_call.1']
    #allocation5 [shape = 'u8[786432]{0}', space=vmem, size = 0xc0000, scoped, tag = 'input window, operand 1, single buffered']
    #allocation6 [shape = 's32[1]{0}', space=sflag, size = 0x4, scoped, tag = 'scoped memory for tpu_custom_call.1']
    #allocation7 [shape = 'u8[3072]{0}', space=vmem, size = 0xc00, scoped, tag = 'input window, operand 2, single buffered']
    #allocation8 [shape = 'u8[16384]{0}', space=vmem, size = 0x4000, scoped, tag = 'output window, operand 0']
    #allocation9 [shape = 'u8[32768]{0}', space=vmem, size = 0x8000, scoped, tag = 'output window, operand 1']
    #allocation10 [shape = 's32[2]{0}', space=sflag, size = 0x8, scoped, tag = 'scoped memory for tpu_custom_call.1']
    %10 = vsyncpa [#allocation3], 0
    %s11 = scalar_lea.sflag [#allocation3], 1
    %12 = vsyncpa %s11, 0
    %13 = vsyncpa [#allocation6], 0
    %14 = vsyncpa [#allocation4], 0
    %s15 = scalar_lea.sflag [#allocation4], 1
    %16 = vsyncpa %s15, 0
    %17 = vsyncpa [#allocation10], 0
    %s18 = scalar_lea.sflag [#allocation10], 1
    %19 = vsyncpa %s18, 0
    loop: start=0, step=1, limit=6
    $region2: #{tpu_custom_call.1} parent=1 // loop_pre_header
      _
    $region3: #{tpu_custom_call.1} parent=1 // loop_header
      %s21 = sphi 0, %s25
      %p22 = scmp.ge.s32.totalorder %s21, 6
      %s28 = sphi 0, %s40
      %s29 = sphi 0, %s36
      %s30 = sphi 0, %s28
      %s31 = sphi 0, %s29
      %s32 = sphi 0, %s30
      %s33 = sphi 0, %s31
      %s45 = sphi 0, %s47
      %s48 = sphi 0, %s45
      %s49 = sphi 0, %s48
      %s65 = sphi 0, %s49
      %s69 = sphi 0, %s69
      %s71 = sphi 0, %s69
      %s72 = sphi 0, %s71
      %s86 = sphi 0, %s72
      %s90 = sphi 0, %s90
      %s92 = sphi 0, %s90
      %s93 = sphi 0, %s92
      %s107 = sphi 0, %s93
      %s115 = sphi 0, %s117
      %s118 = sphi 0, %s115
      %s119 = sphi 0, %s118
      %s135 = sphi 0, %s119
      %s143 = sphi 0, %s145
      %s146 = sphi 0, %s143
      %s147 = sphi 0, %s146
      %s163 = sphi 0, %s147
    $region4: #{tpu_custom_call.1} parent=1 // loop_header_branch
      %24 = sbr.rel (%p22) target = $region8
    $region5: #{tpu_custom_call.1} parent=1 // loop_body
      %s26 = ssub.s32 %s21, 1
      %s27 = ssub.s32 %s21, 2
      %s34 = sadd.s32 1, %s29
      %p35 = scmp.ge.s32.totalorder %s34, 2
      %s36 = scalar_select %p35, 0, %s34
      %s37 = sadd.s32 1, %s28
      %s38 = scalar_select %p35, %s37, %s28
      %p39 = scmp.ge.s32.totalorder %s38, 2
      %s40 = scalar_select %p39, 0, %s38
      %s41 = ssub.s32 %s28, %s40
      %s42 = ssub.s32 %s29, %s36
      %s43 = sor.u32 %s41, %s42
      %p44 = scmp.eq.s32.totalorder %s43, 0
      %s46 = sadd.s32 %s45, 1
      %s47 = scalar_select %p44, %s45, %s46
      %p50 = pneg %p44
      %p51 = scmp.eq.s32.totalorder %s21, 3
      %p52 = por %p50, %p51
      %p53 = scmp.ne.s32.totalorder %s45, %s48
      %p54 = scmp.eq.s32.totalorder %s21, 0
      %p55 = por %p53, %p54
      %p56 = scmp.ne.s32.totalorder %s45, %s48
      %p57 = scmp.eq.s32.totalorder %s26, 3
      %p58 = por %p56, %p57
      %p59 = scmp.ne.s32.totalorder %s48, %s49
      %p60 = scmp.eq.s32.totalorder %s26, 0
      %p61 = por %p59, %p60
      %p62 = scmp.ne.s32.totalorder %s48, %s49
      %p63 = scmp.eq.s32.totalorder %s27, 3
      %p64 = por %p62, %p63
      %p66 = scmp.ne.s32.totalorder %s49, %s65
      %p67 = scmp.eq.s32.totalorder %s27, 0
      %p68 = por %p66, %p67
      %s70 = sadd.s32 %s69, 1
      %p73 = scmp.eq.s32.totalorder %s21, 3
      %p74 = scmp.ne.s32.totalorder %s69, %s71
      %p75 = scmp.eq.s32.totalorder %s21, 0
      %p76 = por %p74, %p75
      %p77 = scmp.ne.s32.totalorder %s69, %s71
      %p78 = scmp.eq.s32.totalorder %s26, 3
      %p79 = por %p77, %p78
      %p80 = scmp.ne.s32.totalorder %s71, %s72
      %p81 = scmp.eq.s32.totalorder %s26, 0
      %p82 = por %p80, %p81
      %p83 = scmp.ne.s32.totalorder %s71, %s72
      %p84 = scmp.eq.s32.totalorder %s27, 3
      %p85 = por %p83, %p84
      %p87 = scmp.ne.s32.totalorder %s72, %s86
      %p88 = scmp.eq.s32.totalorder %s27, 0
      %p89 = por %p87, %p88
      %s91 = sadd.s32 %s90, 1
      %p94 = scmp.eq.s32.totalorder %s21, 3
      %p95 = scmp.ne.s32.totalorder %s90, %s92
      %p96 = scmp.eq.s32.totalorder %s21, 0
      %p97 = por %p95, %p96
      %p98 = scmp.ne.s32.totalorder %s90, %s92
      %p99 = scmp.eq.s32.totalorder %s26, 3
      %p100 = por %p98, %p99
      %p101 = scmp.ne.s32.totalorder %s92, %s93
      %p102 = scmp.eq.s32.totalorder %s26, 0
      %p103 = por %p101, %p102
      %p104 = scmp.ne.s32.totalorder %s92, %s93
      %p105 = scmp.eq.s32.totalorder %s27, 3
      %p106 = por %p104, %p105
      %p108 = scmp.ne.s32.totalorder %s93, %s107
      %p109 = scmp.eq.s32.totalorder %s27, 0
      %p110 = por %p108, %p109
      %s111 = ssub.s32 %s28, %s40
      %s112 = ssub.s32 %s29, %s36
      %s113 = sor.u32 %s111, %s112
      %p114 = scmp.eq.s32.totalorder %s113, 0
      %s116 = sadd.s32 %s115, 1
      %s117 = scalar_select %p114, %s115, %s116
      %p120 = pneg %p114
      %p121 = scmp.eq.s32.totalorder %s21, 3
      %p122 = por %p120, %p121
      %p123 = scmp.ne.s32.totalorder %s115, %s118
      %p124 = scmp.eq.s32.totalorder %s21, 0
      %p125 = por %p123, %p124
      %p126 = scmp.ne.s32.totalorder %s115, %s118
      %p127 = scmp.eq.s32.totalorder %s26, 3
      %p128 = por %p126, %p127
      %p129 = scmp.ne.s32.totalorder %s118, %s119
      %p130 = scmp.eq.s32.totalorder %s26, 0
      %p131 = por %p129, %p130
      %p132 = scmp.ne.s32.totalorder %s118, %s119
      %p133 = scmp.eq.s32.totalorder %s27, 3
      %p134 = por %p132, %p133
      %p136 = scmp.ne.s32.totalorder %s119, %s135
      %p137 = scmp.eq.s32.totalorder %s27, 0
      %p138 = por %p136, %p137
      %s139 = ssub.s32 %s28, %s40
      %s140 = ssub.s32 %s29, %s36
      %s141 = sor.u32 %s139, %s140
      %p142 = scmp.eq.s32.totalorder %s141, 0
      %s144 = sadd.s32 %s143, 1
      %s145 = scalar_select %p142, %s143, %s144
      %p148 = pneg %p142
      %p149 = scmp.eq.s32.totalorder %s21, 3
      %p150 = por %p148, %p149
      %p151 = scmp.ne.s32.totalorder %s143, %s146
      %p152 = scmp.eq.s32.totalorder %s21, 0
      %p153 = por %p151, %p152
      %p154 = scmp.ne.s32.totalorder %s143, %s146
      %p155 = scmp.eq.s32.totalorder %s26, 3
      %p156 = por %p154, %p155
      %p157 = scmp.ne.s32.totalorder %s146, %s147
      %p158 = scmp.eq.s32.totalorder %s26, 0
      %p159 = por %p157, %p158
      %p160 = scmp.ne.s32.totalorder %s146, %s147
      %p161 = scmp.eq.s32.totalorder %s27, 3
      %p162 = por %p160, %p161
      %p164 = scmp.ne.s32.totalorder %s147, %s163
      %p165 = scmp.eq.s32.totalorder %s27, 0
      %p166 = por %p164, %p165
      %p167 = scmp.le.s32.totalorder 1, %s21
      %p168 = scmp.lt.s32.totalorder %s21, 5
      %p169 = pnand %p167, %p168
      %p170 = pneg %p169
      // Predicated region
      $region9: #{tpu_custom_call.1} parent=5 // pred_check
        _
      $region10: #{tpu_custom_call.1} parent=5 // pred_check_branch
        %172 = sbr.rel (%p169) target = $region12
      $region11: #{tpu_custom_call.1} parent=5 // pred_region
        %s173 = ssub.s32 %s21, 1
        // Predicated region
        $region13: #{tpu_custom_call.1} parent=11 // pred_check
          %p174 = pneg %p82
        $region14: #{tpu_custom_call.1} parent=11 // pred_check_branch
          %176 = sbr.rel (%p174) target = $region16
        $region15: #{tpu_custom_call.1} parent=11 // pred_region
          %s178 = ssub.s32 24576, 24576
          %179 = vsyncadd [#allocation6], %s178
          %s180 = sshll.u32 [#allocation5], 4
          %s181 = int_to_ptr.vmem [resolvable:$true] %s180
          %186 = dma.hbm_to_vmem [thread:$0]  %s1, 24576, %s181, [#allocation6], 768, 768, 48
        $region16: #{tpu_custom_call.1} parent=11 // pred_fallthru
          _
        // Predicated region
        $region17: #{tpu_custom_call.1} parent=11 // pred_check
          %p187 = pneg %p103
        $region18: #{tpu_custom_call.1} parent=11 // pred_check_branch
          %189 = sbr.rel (%p187) target = $region20
        $region19: #{tpu_custom_call.1} parent=11 // pred_region
          %s191 = ssub.s32 96, 96
          %192 = vsyncadd [#allocation6], %s191
          %s194 = sshll.u32 [#allocation7], 4
          %s195 = int_to_ptr.vmem [resolvable:$true] %s194
          %197 = dma.hbm_to_vmem [thread:$0]  %s2, 96, %s195, [#allocation6]
        $region20: #{tpu_custom_call.1} parent=11 // pred_fallthru
          _
      $region12: #{tpu_custom_call.1} parent=5 // pred_fallthru
        _
      %p198 = scmp.lt.s32.totalorder %s21, 4
      // Predicated region
      $region21: #{tpu_custom_call.1} parent=5 // pred_check
        %p199 = pneg %p198
      $region22: #{tpu_custom_call.1} parent=5 // pred_check_branch
        %201 = sbr.rel (%p199) target = $region24
      $region23: #{tpu_custom_call.1} parent=5 // pred_region
        // Predicated region
        $region25: #{tpu_custom_call.1} parent=23 // pred_check
          %p202 = pneg %p55
        $region26: #{tpu_custom_call.1} parent=23 // pred_check_branch
          %204 = sbr.rel (%p202) target = $region28
        $region27: #{tpu_custom_call.1} parent=23 // pred_region
          %s205 = sand.u32 %s45, 1
          %s206 = scalar_lea.sflag [#allocation3], %s205
          %s207 = sand.u32 %s45, 1
          %s208 = smul.addr %s207, 16
          %s209 = scalar_lea.vmem [#allocation2], %s208
          %s211 = ssub.s32 256, 256
          %212 = vsyncadd %s206, %s211
          %s213 = smul.addr %s29, 2
          %s214 = smul.addr %s28, 4
          %s215 = sadd.s32 %s213, %s214
          %s216 = smul.addr %s215, 128
          %s217 = scalar_lea.hbm %s0, %s216
          %s219 = sshll.u32 %s209, 4
          %s220 = int_to_ptr.vmem [resolvable:$true] %s219
          %222 = dma.hbm_to_vmem [thread:$0]  %s217, 256, %s220, %s206
        $region28: #{tpu_custom_call.1} parent=23 // pred_fallthru
          _
      $region24: #{tpu_custom_call.1} parent=5 // pred_fallthru
        _
      %p223 = scmp.le.s32.totalorder 1, %s21
      %p224 = scmp.lt.s32.totalorder %s21, 5
      %p225 = pnand %p223, %p224
      %p226 = pneg %p225
      // Predicated region
      $region29: #{tpu_custom_call.1} parent=5 // pred_check
        _
      $region30: #{tpu_custom_call.1} parent=5 // pred_check_branch
        %228 = sbr.rel (%p225) target = $region32
      $region31: #{tpu_custom_call.1} parent=5 // pred_region
        %s229 = ssub.s32 %s21, 1
        %s230 = sand.u32 %s48, 1
        %s231 = scalar_lea.sflag [#allocation3], %s230
        %s232 = sand.u32 %s48, 1
        %s233 = smul.addr %s232, 16
        %s234 = scalar_lea.vmem [#allocation2], %s233
        // Predicated region
        $region33: #{tpu_custom_call.1} parent=31 // pred_check
          %p235 = pneg %p61
        $region34: #{tpu_custom_call.1} parent=31 // pred_check_branch
          %237 = sbr.rel (%p235) target = $region36
        $region35: #{tpu_custom_call.1} parent=31 // pred_region
          %238 = dma.done %s231, 256
        $region36: #{tpu_custom_call.1} parent=31 // pred_fallthru
          _
        // Predicated region
        $region37: #{tpu_custom_call.1} parent=31 // pred_check
          %p239 = pneg %p82
        $region38: #{tpu_custom_call.1} parent=31 // pred_check_branch
          %241 = sbr.rel (%p239) target = $region40
        $region39: #{tpu_custom_call.1} parent=31 // pred_region
          %242 = dma.done [#allocation6], 24576
        $region40: #{tpu_custom_call.1} parent=31 // pred_fallthru
          _
        // Predicated region
        $region41: #{tpu_custom_call.1} parent=31 // pred_check
          %p243 = pneg %p103
        $region42: #{tpu_custom_call.1} parent=31 // pred_check_branch
          %245 = sbr.rel (%p243) target = $region44
        $region43: #{tpu_custom_call.1} parent=31 // pred_region
          %246 = dma.done [#allocation6], 96
        $region44: #{tpu_custom_call.1} parent=31 // pred_fallthru
          _
        %s247 = sand.u32 %s48, 1
        %s248 = scalar_lea.sflag [#allocation3], %s247
        %s249 = sand.u32 %s48, 1
        %s250 = smul.addr %s249, 16
        %s251 = scalar_lea.vmem [#allocation2], %s250
        %p252 = pneg %p61
        %p253 = pneg %p58
        %p254 = pneg %p82
        %p255 = pneg %p79
        %p256 = pneg %p103
        %p257 = pneg %p100
        %p258 = pneg %p131
        %p259 = pneg %p128
        %s260 = sand.u32 %s118, 1
        %s261 = scalar_lea.sflag [#allocation4], %s260
        %s262 = sand.u32 %s118, 1
        %s263 = smul.addr %s262, 16
        %s264 = scalar_lea.vmem [#allocation8], %s263
        %p265 = pneg %p159
        %p266 = pneg %p156
        %s267 = sand.u32 %s146, 1
        %s268 = scalar_lea.sflag [#allocation10], %s267
        %s269 = sand.u32 %s146, 1
        %s270 = smul.addr %s269, 32
        %s271 = scalar_lea.vmem [#allocation9], %s270
        %v272 = vld [vmem:[%s234] sm:$0xff]
        %v273 = vld [vmem:[%s234 + $0x8] sm:$0xff]
        %v274 = vld [vmem:[#allocation5] sm:$0xff]
        %v275 = vld [vmem:[#allocation5 + $0x8] sm:$0xff]
        %v276 = vld [vmem:[#allocation5 + $0x10] sm:$0xff]
        %v277 = vld [vmem:[#allocation5 + $0x18] sm:$0xff]
        %v278 = vld [vmem:[#allocation5 + $0x20] sm:$0xff]
        %v279 = vld [vmem:[#allocation5 + $0x28] sm:$0xff]
        %v280 = vld [vmem:[#allocation5 + $0x30] sm:$0xff]
        %v281 = vld [vmem:[#allocation5 + $0x38] sm:$0xff]
        %v282 = vld [vmem:[#allocation5 + $0x40] sm:$0xff]
        %v283 = vld [vmem:[#allocation5 + $0x48] sm:$0xff]
        %v284 = vld [vmem:[#allocation5 + $0x50] sm:$0xff]
        %v285 = vld [vmem:[#allocation5 + $0x58] sm:$0xff]
        %v286 = vld [vmem:[#allocation5 + $0x60] sm:$0xff]
        %v287 = vld [vmem:[#allocation5 + $0x68] sm:$0xff]
        %v288 = vld [vmem:[#allocation5 + $0x70] sm:$0xff]
        %v289 = vld [vmem:[#allocation5 + $0x78] sm:$0xff]
        %v290 = vld [vmem:[#allocation5 + $0x80] sm:$0xff]
        %v291 = vld [vmem:[#allocation5 + $0x88] sm:$0xff]
        %v292 = vld [vmem:[#allocation5 + $0x90] sm:$0xff]
        %v293 = vld [vmem:[#allocation5 + $0x98] sm:$0xff]
        %v294 = vld [vmem:[#allocation5 + $0xa0] sm:$0xff]
        %v295 = vld [vmem:[#allocation5 + $0xa8] sm:$0xff]
        %v296 = vld [vmem:[#allocation5 + $0xb0] sm:$0xff]
        %v297 = vld [vmem:[#allocation5 + $0xb8] sm:$0xff]
        %v298 = vld [vmem:[#allocation5 + $0xc0] sm:$0xff]
        %v299 = vld [vmem:[#allocation5 + $0xc8] sm:$0xff]
        %v300 = vld [vmem:[#allocation5 + $0xd0] sm:$0xff]
        %v301 = vld [vmem:[#allocation5 + $0xd8] sm:$0xff]
        %v302 = vld [vmem:[#allocation5 + $0xe0] sm:$0xff]
        %v303 = vld [vmem:[#allocation5 + $0xe8] sm:$0xff]
        %v304 = vld [vmem:[#allocation5 + $0xf0] sm:$0xff]
        %v305 = vld [vmem:[#allocation5 + $0xf8] sm:$0xff]
        %v306 = vld [vmem:[#allocation5 + $0x100] sm:$0xff]
        %v307 = vld [vmem:[#allocation5 + $0x108] sm:$0xff]
        %v308 = vld [vmem:[#allocation5 + $0x110] sm:$0xff]
        %v309 = vld [vmem:[#allocation5 + $0x118] sm:$0xff]
        %v310 = vld [vmem:[#allocation5 + $0x120] sm:$0xff]
        %v311 = vld [vmem:[#allocation5 + $0x128] sm:$0xff]
        %v312 = vld [vmem:[#allocation5 + $0x130] sm:$0xff]
        %v313 = vld [vmem:[#allocation5 + $0x138] sm:$0xff]
        %v314 = vld [vmem:[#allocation5 + $0x140] sm:$0xff]
        %v315 = vld [vmem:[#allocation5 + $0x148] sm:$0xff]
        %v316 = vld [vmem:[#allocation5 + $0x150] sm:$0xff]
        %v317 = vld [vmem:[#allocation5 + $0x158] sm:$0xff]
        %v318 = vld [vmem:[#allocation5 + $0x160] sm:$0xff]
        %v319 = vld [vmem:[#allocation5 + $0x168] sm:$0xff]
        %v320 = vld [vmem:[#allocation5 + $0x170] sm:$0xff]
        %v321 = vld [vmem:[#allocation5 + $0x178] sm:$0xff]
        %v322 = vld [vmem:[#allocation5 + $0x180] sm:$0xff]
        %v323 = vld [vmem:[#allocation5 + $0x188] sm:$0xff]
        %v324 = vld [vmem:[#allocation5 + $0x190] sm:$0xff]
        %v325 = vld [vmem:[#allocation5 + $0x198] sm:$0xff]
        %v326 = vld [vmem:[#allocation5 + $0x1a0] sm:$0xff]
        %v327 = vld [vmem:[#allocation5 + $0x1a8] sm:$0xff]
        %v328 = vld [vmem:[#allocation5 + $0x1b0] sm:$0xff]
        %v329 = vld [vmem:[#allocation5 + $0x1b8] sm:$0xff]
        %v330 = vld [vmem:[#allocation5 + $0x1c0] sm:$0xff]
        %v331 = vld [vmem:[#allocation5 + $0x1c8] sm:$0xff]
        %v332 = vld [vmem:[#allocation5 + $0x1d0] sm:$0xff]
        %v333 = vld [vmem:[#allocation5 + $0x1d8] sm:$0xff]
        %v334 = vld [vmem:[#allocation5 + $0x1e0] sm:$0xff]
        %v335 = vld [vmem:[#allocation5 + $0x1e8] sm:$0xff]
        %v336 = vld [vmem:[#allocation5 + $0x1f0] sm:$0xff]
        %v337 = vld [vmem:[#allocation5 + $0x1f8] sm:$0xff]
        %v338 = vld [vmem:[#allocation5 + $0x200] sm:$0xff]
        %v339 = vld [vmem:[#allocation5 + $0x208] sm:$0xff]
        %v340 = vld [vmem:[#allocation5 + $0x210] sm:$0xff]
        %v341 = vld [vmem:[#allocation5 + $0x218] sm:$0xff]
        %v342 = vld [vmem:[#allocation5 + $0x220] sm:$0xff]
        %v343 = vld [vmem:[#allocation5 + $0x228] sm:$0xff]
        %v344 = vld [vmem:[#allocation5 + $0x230] sm:$0xff]
        %v345 = vld [vmem:[#allocation5 + $0x238] sm:$0xff]
        %v346 = vld [vmem:[#allocation5 + $0x240] sm:$0xff]
        %v347 = vld [vmem:[#allocation5 + $0x248] sm:$0xff]
        %v348 = vld [vmem:[#allocation5 + $0x250] sm:$0xff]
        %v349 = vld [vmem:[#allocation5 + $0x258] sm:$0xff]
        %v350 = vld [vmem:[#allocation5 + $0x260] sm:$0xff]
        %v351 = vld [vmem:[#allocation5 + $0x268] sm:$0xff]
        %v352 = vld [vmem:[#allocation5 + $0x270] sm:$0xff]
        %v353 = vld [vmem:[#allocation5 + $0x278] sm:$0xff]
        %v354 = vld [vmem:[#allocation5 + $0x280] sm:$0xff]
        %v355 = vld [vmem:[#allocation5 + $0x288] sm:$0xff]
        %v356 = vld [vmem:[#allocation5 + $0x290] sm:$0xff]
        %v357 = vld [vmem:[#allocation5 + $0x298] sm:$0xff]
        %v358 = vld [vmem:[#allocation5 + $0x2a0] sm:$0xff]
        %v359 = vld [vmem:[#allocation5 + $0x2a8] sm:$0xff]
        %v360 = vld [vmem:[#allocation5 + $0x2b0] sm:$0xff]
        %v361 = vld [vmem:[#allocation5 + $0x2b8] sm:$0xff]
        %v362 = vld [vmem:[#allocation5 + $0x2c0] sm:$0xff]
        %v363 = vld [vmem:[#allocation5 + $0x2c8] sm:$0xff]
        %v364 = vld [vmem:[#allocation5 + $0x2d0] sm:$0xff]
        %v365 = vld [vmem:[#allocation5 + $0x2d8] sm:$0xff]
        %v366 = vld [vmem:[#allocation5 + $0x2e0] sm:$0xff]
        %v367 = vld [vmem:[#allocation5 + $0x2e8] sm:$0xff]
        %v368 = vld [vmem:[#allocation5 + $0x2f0] sm:$0xff]
        %v369 = vld [vmem:[#allocation5 + $0x2f8] sm:$0xff]
        %v370 = vld [vmem:[#allocation5 + $0x300] sm:$0xff]
        %v371 = vld [vmem:[#allocation5 + $0x308] sm:$0xff]
        %v372 = vld [vmem:[#allocation5 + $0x310] sm:$0xff]
        %v373 = vld [vmem:[#allocation5 + $0x318] sm:$0xff]
        %v374 = vld [vmem:[#allocation5 + $0x320] sm:$0xff]
        %v375 = vld [vmem:[#allocation5 + $0x328] sm:$0xff]
        %v376 = vld [vmem:[#allocation5 + $0x330] sm:$0xff]
        %v377 = vld [vmem:[#allocation5 + $0x338] sm:$0xff]
        %v378 = vld [vmem:[#allocation5 + $0x340] sm:$0xff]
        %v379 = vld [vmem:[#allocation5 + $0x348] sm:$0xff]
        %v380 = vld [vmem:[#allocation5 + $0x350] sm:$0xff]
        %v381 = vld [vmem:[#allocation5 + $0x358] sm:$0xff]
        %v382 = vld [vmem:[#allocation5 + $0x360] sm:$0xff]
        %v383 = vld [vmem:[#allocation5 + $0x368] sm:$0xff]
        %v384 = vld [vmem:[#allocation5 + $0x370] sm:$0xff]
        %v385 = vld [vmem:[#allocation5 + $0x378] sm:$0xff]
        %v386 = vld [vmem:[#allocation5 + $0x380] sm:$0xff]
        %v387 = vld [vmem:[#allocation5 + $0x388] sm:$0xff]
        %v388 = vld [vmem:[#allocation5 + $0x390] sm:$0xff]
        %v389 = vld [vmem:[#allocation5 + $0x398] sm:$0xff]
        %v390 = vld [vmem:[#allocation5 + $0x3a0] sm:$0xff]
        %v391 = vld [vmem:[#allocation5 + $0x3a8] sm:$0xff]
        %v392 = vld [vmem:[#allocation5 + $0x3b0] sm:$0xff]
        %v393 = vld [vmem:[#allocation5 + $0x3b8] sm:$0xff]
        %v394 = vld [vmem:[#allocation5 + $0x3c0] sm:$0xff]
        %v395 = vld [vmem:[#allocation5 + $0x3c8] sm:$0xff]
        %v396 = vld [vmem:[#allocation5 + $0x3d0] sm:$0xff]
        %v397 = vld [vmem:[#allocation5 + $0x3d8] sm:$0xff]
        %v398 = vld [vmem:[#allocation5 + $0x3e0] sm:$0xff]
        %v399 = vld [vmem:[#allocation5 + $0x3e8] sm:$0xff]
        %v400 = vld [vmem:[#allocation5 + $0x3f0] sm:$0xff]
        %v401 = vld [vmem:[#allocation5 + $0x3f8] sm:$0xff]
        %v402 = vld [vmem:[#allocation5 + $0x400] sm:$0xff]
        %v403 = vld [vmem:[#allocation5 + $0x408] sm:$0xff]
        %v404 = vld [vmem:[#allocation5 + $0x410] sm:$0xff]
        %v405 = vld [vmem:[#allocation5 + $0x418] sm:$0xff]
        %v406 = vld [vmem:[#allocation5 + $0x420] sm:$0xff]
        %v407 = vld [vmem:[#allocation5 + $0x428] sm:$0xff]
        %v408 = vld [vmem:[#allocation5 + $0x430] sm:$0xff]
        %v409 = vld [vmem:[#allocation5 + $0x438] sm:$0xff]
        %v410 = vld [vmem:[#allocation5 + $0x440] sm:$0xff]
        %v411 = vld [vmem:[#allocation5 + $0x448] sm:$0xff]
        %v412 = vld [vmem:[#allocation5 + $0x450] sm:$0xff]
        %v413 = vld [vmem:[#allocation5 + $0x458] sm:$0xff]
        %v414 = vld [vmem:[#allocation5 + $0x460] sm:$0xff]
        %v415 = vld [vmem:[#allocation5 + $0x468] sm:$0xff]
        %v416 = vld [vmem:[#allocation5 + $0x470] sm:$0xff]
        %v417 = vld [vmem:[#allocation5 + $0x478] sm:$0xff]
        %v418 = vld [vmem:[#allocation5 + $0x480] sm:$0xff]
        %v419 = vld [vmem:[#allocation5 + $0x488] sm:$0xff]
        %v420 = vld [vmem:[#allocation5 + $0x490] sm:$0xff]
        %v421 = vld [vmem:[#allocation5 + $0x498] sm:$0xff]
        %v422 = vld [vmem:[#allocation5 + $0x4a0] sm:$0xff]
        %v423 = vld [vmem:[#allocation5 + $0x4a8] sm:$0xff]
        %v424 = vld [vmem:[#allocation5 + $0x4b0] sm:$0xff]
        %v425 = vld [vmem:[#allocation5 + $0x4b8] sm:$0xff]
        %v426 = vld [vmem:[#allocation5 + $0x4c0] sm:$0xff]
        %v427 = vld [vmem:[#allocation5 + $0x4c8] sm:$0xff]
        %v428 = vld [vmem:[#allocation5 + $0x4d0] sm:$0xff]
        %v429 = vld [vmem:[#allocation5 + $0x4d8] sm:$0xff]
        %v430 = vld [vmem:[#allocation5 + $0x4e0] sm:$0xff]
        %v431 = vld [vmem:[#allocation5 + $0x4e8] sm:$0xff]
        %v432 = vld [vmem:[#allocation5 + $0x4f0] sm:$0xff]
        %v433 = vld [vmem:[#allocation5 + $0x4f8] sm:$0xff]
        %v434 = vld [vmem:[#allocation5 + $0x500] sm:$0xff]
        %v435 = vld [vmem:[#allocation5 + $0x508] sm:$0xff]
        %v436 = vld [vmem:[#allocation5 + $0x510] sm:$0xff]
        %v437 = vld [vmem:[#allocation5 + $0x518] sm:$0xff]
        %v438 = vld [vmem:[#allocation5 + $0x520] sm:$0xff]
        %v439 = vld [vmem:[#allocation5 + $0x528] sm:$0xff]
        %v440 = vld [vmem:[#allocation5 + $0x530] sm:$0xff]
        %v441 = vld [vmem:[#allocation5 + $0x538] sm:$0xff]
        %v442 = vld [vmem:[#allocation5 + $0x540] sm:$0xff]
        %v443 = vld [vmem:[#allocation5 + $0x548] sm:$0xff]
        %v444 = vld [vmem:[#allocation5 + $0x550] sm:$0xff]
        %v445 = vld [vmem:[#allocation5 + $0x558] sm:$0xff]
        %v446 = vld [vmem:[#allocation5 + $0x560] sm:$0xff]
        %v447 = vld [vmem:[#allocation5 + $0x568] sm:$0xff]
        %v448 = vld [vmem:[#allocation5 + $0x570] sm:$0xff]
        %v449 = vld [vmem:[#allocation5 + $0x578] sm:$0xff]
        %v450 = vld [vmem:[#allocation5 + $0x580] sm:$0xff]
        %v451 = vld [vmem:[#allocation5 + $0x588] sm:$0xff]
        %v452 = vld [vmem:[#allocation5 + $0x590] sm:$0xff]
        %v453 = vld [vmem:[#allocation5 + $0x598] sm:$0xff]
        %v454 = vld [vmem:[#allocation5 + $0x5a0] sm:$0xff]
        %v455 = vld [vmem:[#allocation5 + $0x5a8] sm:$0xff]
        %v456 = vld [vmem:[#allocation5 + $0x5b0] sm:$0xff]
        %v457 = vld [vmem:[#allocation5 + $0x5b8] sm:$0xff]
        %v458 = vld [vmem:[#allocation5 + $0x5c0] sm:$0xff]
        %v459 = vld [vmem:[#allocation5 + $0x5c8] sm:$0xff]
        %v460 = vld [vmem:[#allocation5 + $0x5d0] sm:$0xff]
        %v461 = vld [vmem:[#allocation5 + $0x5d8] sm:$0xff]
        %v462 = vld [vmem:[#allocation5 + $0x5e0] sm:$0xff]
        %v463 = vld [vmem:[#allocation5 + $0x5e8] sm:$0xff]
        %v464 = vld [vmem:[#allocation5 + $0x5f0] sm:$0xff]
        %v465 = vld [vmem:[#allocation5 + $0x5f8] sm:$0xff]
        %v466 = vld [vmem:[#allocation7] sm:$0x3f]
        %v468 = vlaneseq
        %v469 = vshrl.u32 %v468, 7
        %v470 = vsub.s32 0, %v469
        %v471 = vrot.slane %v466, %v470
        %v472 = vlaneseq
        %v473 = vshrl.u32 %v472, 7
        %v474 = vsub.s32 1, %v473
        %v475 = vrot.slane %v466, %v474
        %v476 = vlaneseq
        %v477 = vshrl.u32 %v476, 7
        %v478 = vsub.s32 2, %v477
        %v479 = vrot.slane %v466, %v478
        %v480 = vlaneseq
        %v481 = vshrl.u32 %v480, 7
        %v482 = vsub.s32 3, %v481
        %v483 = vrot.slane %v466, %v482
        %v484 = vlaneseq
        %v485 = vshrl.u32 %v484, 7
        %v486 = vsub.s32 4, %v485
        %v487 = vrot.slane %v466, %v486
        %v488 = vlaneseq
        %v489 = vshrl.u32 %v488, 7
        %v490 = vsub.s32 5, %v489
        %v491 = vrot.slane %v466, %v490
        %498 = vmatprep.subr.mxu0 %v275
        %499 = vmatpush1.msra.mxu0 %v274
        %500 = vmatprep.subr.mxu0 %v281
        %501 = vmatpush1.msra.mxu0 %v280
        %502 = vmatprep.subr.mxu0 %v287
        %503 = vmatpush1.msra.mxu0 %v286
        %504 = vmatprep.subr.mxu0 %v293
        %505 = vmatpush1.msra.mxu0 %v292
        %506 = vmatprep.subr.mxu0 %v299
        %507 = vmatpush1.msra.mxu0 %v298
        %508 = vmatprep.subr.mxu0 %v305
        %509 = vmatpush1.msra.mxu0 %v304
        %510 = vmatprep.subr.mxu0 %v311
        %511 = vmatpush1.msra.mxu0 %v310
        %512 = vmatprep.subr.mxu0 %v317
        %513 = vmatpush1.msra.mxu0 %v316
        %514 = vmatprep.subr.mxu0 %v323
        %515 = vmatpush1.msra.mxu0 %v322
        %516 = vmatprep.subr.mxu0 %v329
        %517 = vmatpush1.msra.mxu0 %v328
        %518 = vmatprep.subr.mxu0 %v335
        %519 = vmatpush1.msra.mxu0 %v334
        %520 = vmatprep.subr.mxu0 %v341
        %521 = vmatpush1.msra.mxu0 %v340
        %522 = vmatprep.subr.mxu0 %v347
        %523 = vmatpush1.msra.mxu0 %v346
        %524 = vmatprep.subr.mxu0 %v353
        %525 = vmatpush1.msra.mxu0 %v352
        %526 = vmatprep.subr.mxu0 %v359
        %527 = vmatpush1.msra.mxu0 %v358
        %528 = vmatprep.subr.mxu0 %v365
        %529 = vmatpush1.msra.mxu0 %v364
        %530 = vmatprep.subr.mxu0 %v371
        %531 = vmatpush1.msra.mxu0 %v370
        %532 = vmatprep.subr.mxu0 %v377
        %533 = vmatpush1.msra.mxu0 %v376
        %534 = vmatprep.subr.mxu0 %v383
        %535 = vmatpush1.msra.mxu0 %v382
        %536 = vmatprep.subr.mxu0 %v389
        %537 = vmatpush1.msra.mxu0 %v388
        %538 = vmatprep.subr.mxu0 %v395
        %539 = vmatpush1.msra.mxu0 %v394
        %540 = vmatprep.subr.mxu0 %v401
        %541 = vmatpush1.msra.mxu0 %v400
        %542 = vmatprep.subr.mxu0 %v407
        %543 = vmatpush1.msra.mxu0 %v406
        %544 = vmatprep.subr.mxu0 %v413
        %545 = vmatpush1.msra.mxu0 %v412
        %546 = vmatprep.subr.mxu0 %v419
        %547 = vmatpush1.msra.mxu0 %v418
        %548 = vmatprep.subr.mxu0 %v425
        %549 = vmatpush1.msra.mxu0 %v424
        %550 = vmatprep.subr.mxu0 %v431
        %551 = vmatpush1.msra.mxu0 %v430
        %552 = vmatprep.subr.mxu0 %v437
        %553 = vmatpush1.msra.mxu0 %v436
        %554 = vmatprep.subr.mxu0 %v443
        %555 = vmatpush1.msra.mxu0 %v442
        %556 = vmatprep.subr.mxu0 %v449
        %557 = vmatpush1.msra.mxu0 %v448
        %558 = vmatprep.subr.mxu0 %v455
        %559 = vmatpush1.msra.mxu0 %v454
        %560 = vmatprep.subr.mxu0 %v461
        %561 = vmatpush1.msra.mxu0 %v460
        %562 = vmatprep.mubr.f32.mxu0 %v273
        %563 = vmatmul.mubr.f32.gmra.mrb[0].mxu0 %v272
        %v564 = vpop.f32.mrb[0].mxu0
        %v565 = vadd.f32 %v471, %v564
        %v566 = vpop.f32.mrb[0].mxu0
        %v567 = vadd.f32 %v475, %v566
        %568 = vdwg.mxu0
        %569 = vmatprep.subr.mxu0 %v277
        %570 = vmatpush1.msra.mxu0 %v276
        %571 = vmatprep.subr.mxu0 %v283
        %572 = vmatpush1.msra.mxu0 %v282
        %573 = vmatprep.subr.mxu0 %v289
        %574 = vmatpush1.msra.mxu0 %v288
        %575 = vmatprep.subr.mxu0 %v295
        %576 = vmatpush1.msra.mxu0 %v294
        %577 = vmatprep.subr.mxu0 %v301
        %578 = vmatpush1.msra.mxu0 %v300
        %579 = vmatprep.subr.mxu0 %v307
        %580 = vmatpush1.msra.mxu0 %v306
        %581 = vmatprep.subr.mxu0 %v313
        %582 = vmatpush1.msra.mxu0 %v312
        %583 = vmatprep.subr.mxu0 %v319
        %584 = vmatpush1.msra.mxu0 %v318
        %585 = vmatprep.subr.mxu0 %v325
        %586 = vmatpush1.msra.mxu0 %v324
        %587 = vmatprep.subr.mxu0 %v331
        %588 = vmatpush1.msra.mxu0 %v330
        %589 = vmatprep.subr.mxu0 %v337
        %590 = vmatpush1.msra.mxu0 %v336
        %591 = vmatprep.subr.mxu0 %v343
        %592 = vmatpush1.msra.mxu0 %v342
        %593 = vmatprep.subr.mxu0 %v349
        %594 = vmatpush1.msra.mxu0 %v348
        %595 = vmatprep.subr.mxu0 %v355
        %596 = vmatpush1.msra.mxu0 %v354
        %597 = vmatprep.subr.mxu0 %v361
        %598 = vmatpush1.msra.mxu0 %v360
        %599 = vmatprep.subr.mxu0 %v367
        %600 = vmatpush1.msra.mxu0 %v366
        %601 = vmatprep.subr.mxu0 %v373
        %602 = vmatpush1.msra.mxu0 %v372
        %603 = vmatprep.subr.mxu0 %v379
        %604 = vmatpush1.msra.mxu0 %v378
        %605 = vmatprep.subr.mxu0 %v385
        %606 = vmatpush1.msra.mxu0 %v384
        %607 = vmatprep.subr.mxu0 %v391
        %608 = vmatpush1.msra.mxu0 %v390
        %609 = vmatprep.subr.mxu0 %v397
        %610 = vmatpush1.msra.mxu0 %v396
        %611 = vmatprep.subr.mxu0 %v403
        %612 = vmatpush1.msra.mxu0 %v402
        %613 = vmatprep.subr.mxu0 %v409
        %614 = vmatpush1.msra.mxu0 %v408
        %615 = vmatprep.subr.mxu0 %v415
        %616 = vmatpush1.msra.mxu0 %v414
        %617 = vmatprep.subr.mxu0 %v421
        %618 = vmatpush1.msra.mxu0 %v420
        %619 = vmatprep.subr.mxu0 %v427
        %620 = vmatpush1.msra.mxu0 %v426
        %621 = vmatprep.subr.mxu0 %v433
        %622 = vmatpush1.msra.mxu0 %v432
        %623 = vmatprep.subr.mxu0 %v439
        %624 = vmatpush1.msra.mxu0 %v438
        %625 = vmatprep.subr.mxu0 %v445
        %626 = vmatpush1.msra.mxu0 %v444
        %627 = vmatprep.subr.mxu0 %v451
        %628 = vmatpush1.msra.mxu0 %v450
        %629 = vmatprep.subr.mxu0 %v457
        %630 = vmatpush1.msra.mxu0 %v456
        %631 = vmatprep.subr.mxu0 %v463
        %632 = vmatpush1.msra.mxu0 %v462
        %633 = vmatprep.mubr.f32.mxu0 %v273
        %634 = vmatmul.mubr.f32.gmra.mrb[0].mxu0 %v272
        %v635 = vpop.f32.mrb[0].mxu0
        %v636 = vadd.f32 %v479, %v635
        %v637 = vpop.f32.mrb[0].mxu0
        %v638 = vadd.f32 %v483, %v637
        %639 = vdwg.mxu0
        %640 = vmatprep.subr.mxu0 %v279
        %641 = vmatpush1.msra.mxu0 %v278
        %642 = vmatprep.subr.mxu0 %v285
        %643 = vmatpush1.msra.mxu0 %v284
        %644 = vmatprep.subr.mxu0 %v291
        %645 = vmatpush1.msra.mxu0 %v290
        %646 = vmatprep.subr.mxu0 %v297
        %647 = vmatpush1.msra.mxu0 %v296
        %648 = vmatprep.subr.mxu0 %v303
        %649 = vmatpush1.msra.mxu0 %v302
        %650 = vmatprep.subr.mxu0 %v309
        %651 = vmatpush1.msra.mxu0 %v308
        %652 = vmatprep.subr.mxu0 %v315
        %653 = vmatpush1.msra.mxu0 %v314
        %654 = vmatprep.subr.mxu0 %v321
        %655 = vmatpush1.msra.mxu0 %v320
        %656 = vmatprep.subr.mxu0 %v327
        %657 = vmatpush1.msra.mxu0 %v326
        %658 = vmatprep.subr.mxu0 %v333
        %659 = vmatpush1.msra.mxu0 %v332
        %660 = vmatprep.subr.mxu0 %v339
        %661 = vmatpush1.msra.mxu0 %v338
        %662 = vmatprep.subr.mxu0 %v345
        %663 = vmatpush1.msra.mxu0 %v344
        %664 = vmatprep.subr.mxu0 %v351
        %665 = vmatpush1.msra.mxu0 %v350
        %666 = vmatprep.subr.mxu0 %v357
        %667 = vmatpush1.msra.mxu0 %v356
        %668 = vmatprep.subr.mxu0 %v363
        %669 = vmatpush1.msra.mxu0 %v362
        %670 = vmatprep.subr.mxu0 %v369
        %671 = vmatpush1.msra.mxu0 %v368
        %672 = vmatprep.subr.mxu0 %v375
        %673 = vmatpush1.msra.mxu0 %v374
        %674 = vmatprep.subr.mxu0 %v381
        %675 = vmatpush1.msra.mxu0 %v380
        %676 = vmatprep.subr.mxu0 %v387
        %677 = vmatpush1.msra.mxu0 %v386
        %678 = vmatprep.subr.mxu0 %v393
        %679 = vmatpush1.msra.mxu0 %v392
        %680 = vmatprep.subr.mxu0 %v399
        %681 = vmatpush1.msra.mxu0 %v398
        %682 = vmatprep.subr.mxu0 %v405
        %683 = vmatpush1.msra.mxu0 %v404
        %684 = vmatprep.subr.mxu0 %v411
        %685 = vmatpush1.msra.mxu0 %v410
        %686 = vmatprep.subr.mxu0 %v417
        %687 = vmatpush1.msra.mxu0 %v416
        %688 = vmatprep.subr.mxu0 %v423
        %689 = vmatpush1.msra.mxu0 %v422
        %690 = vmatprep.subr.mxu0 %v429
        %691 = vmatpush1.msra.mxu0 %v428
        %692 = vmatprep.subr.mxu0 %v435
        %693 = vmatpush1.msra.mxu0 %v434
        %694 = vmatprep.subr.mxu0 %v441
        %695 = vmatpush1.msra.mxu0 %v440
        %696 = vmatprep.subr.mxu0 %v447
        %697 = vmatpush1.msra.mxu0 %v446
        %698 = vmatprep.subr.mxu0 %v453
        %699 = vmatpush1.msra.mxu0 %v452
        %700 = vmatprep.subr.mxu0 %v459
        %701 = vmatpush1.msra.mxu0 %v458
        %702 = vmatprep.subr.mxu0 %v465
        %703 = vmatpush1.msra.mxu0 %v464
        %704 = vmatprep.mubr.f32.mxu0 %v273
        %705 = vmatmul.mubr.f32.gmra.mrb[0].mxu0 %v272
        %v706 = vpop.f32.mrb[0].mxu0
        %v707 = vadd.f32 %v487, %v706
        %v708 = vpop.f32.mrb[0].mxu0
        %v709 = vadd.f32 %v491, %v708
        %710 = vdwg.mxu0
        %711 = vst [vmem:[%s264] sm:$0xff] %v565
        %712 = vst [vmem:[%s271] sm:$0xff] %v636
        %s713 = scalar_lea.vmem %s271, 16 [#allocation9]
        %714 = vst [vmem:[%s713] sm:$0xff] %v707
        %s715 = scalar_lea.vmem %s264, 8 [#allocation8]
        %716 = vst [vmem:[%s715] sm:$0xff] %v567
        %s717 = scalar_lea.vmem %s271, 8 [#allocation9]
        %718 = vst [vmem:[%s717] sm:$0xff] %v638
        %s719 = scalar_lea.vmem %s271, 24 [#allocation9]
        %720 = vst [vmem:[%s719] sm:$0xff] %v709
        %s721 = sand.u32 %s118, 1
        %s722 = scalar_lea.sflag [#allocation4], %s721
        %s723 = sand.u32 %s118, 1
        %s724 = smul.addr %s723, 16
        %s725 = scalar_lea.vmem [#allocation8], %s724
        %s726 = sand.u32 %s146, 1
        %s727 = scalar_lea.sflag [#allocation10], %s726
        %s728 = sand.u32 %s146, 1
        %s729 = smul.addr %s728, 32
        %s730 = scalar_lea.vmem [#allocation9], %s729
        // Predicated region
        $region45: #{tpu_custom_call.1} parent=31 // pred_check
          %p731 = pneg %p128
        $region46: #{tpu_custom_call.1} parent=31 // pred_check_branch
          %733 = sbr.rel (%p731) target = $region48
        $region47: #{tpu_custom_call.1} parent=31 // pred_region
          %s735 = ssub.s32 256, 256
          %736 = vsyncadd %s722, %s735
          %s737 = smul.addr %s30, 4
          %s738 = sadd.s32 %s31, %s737
          %s739 = smul.addr %s738, 128
          %s740 = scalar_lea.hbm %s3, %s739
          %s741 = sshll.u32 %s725, 4
          %s742 = int_to_ptr.vmem [resolvable:$true] %s741
          %747 = dma.vmem_to_hbm [thread:$0]  %s742, 256, %s740, %s722, 128, 256, 8
        $region48: #{tpu_custom_call.1} parent=31 // pred_fallthru
          _
        // Predicated region
        $region49: #{tpu_custom_call.1} parent=31 // pred_check
          %p748 = pneg %p156
        $region50: #{tpu_custom_call.1} parent=31 // pred_check_branch
          %750 = sbr.rel (%p748) target = $region52
        $region51: #{tpu_custom_call.1} parent=31 // pred_region
          #allocation12 [shape = 'u32[6]{0}', space=smem, size = 0x18, scoped, tag = 'DMA stride descriptor']
          %s752 = ssub.s32 512, 512
          %753 = vsyncadd %s727, %s752
          %s754 = smul.addr %s30, 4
          %s755 = sadd.s32 %s31, %s754
          %s756 = smul.addr %s755, 128
          %s757 = scalar_lea.hbm %s4, %s756
          %s759 = sshll.u32 1, 14
          %s760 = sxor.u32 4294967295, %s759
          %s763 = sshll.u32 7, 18
          %s764 = sxor.u32 4294967295, %s763
          %s765 = sand.u32 0, %s764
          %s767 = sor.u32 %s765, 0
          %s769 = sshll.u32 3, 24
          %s770 = sxor.u32 4294967295, %s769
          %s771 = sand.u32 %s767, %s770
          %s773 = sor.u32 %s771, 0
          %s774 = sshll.u32 %s730, 4
          %s775 = int_to_ptr.vmem [resolvable:$true] %s774
          %781 = sst [smem:[#allocation12]] 256
          %s782 = scalar_lea.smem [#allocation12], 1
          %783 = sst [smem:[%s782]] 1024
          %s784 = scalar_lea.smem [#allocation12], 2
          %785 = sst [smem:[%s784]] 2
          %s786 = scalar_lea.smem [#allocation12], 3
          %787 = sst [smem:[%s786]] 128
          %s788 = scalar_lea.smem [#allocation12], 4
          %789 = sst [smem:[%s788]] 256
          %s790 = scalar_lea.smem [#allocation12], 5
          %791 = sst [smem:[%s790]] 8
          %793 = dma.general %s775, 512, %s757, %s727, [#allocation11], [#allocation12], %s773, 0
        $region52: #{tpu_custom_call.1} parent=31 // pred_fallthru
          _
      $region32: #{tpu_custom_call.1} parent=5 // pred_fallthru
        _
      %p794 = scmp.le.s32.totalorder 2, %s21
      // Predicated region
      $region53: #{tpu_custom_call.1} parent=5 // pred_check
        %p795 = pneg %p794
      $region54: #{tpu_custom_call.1} parent=5 // pred_check_branch
        %797 = sbr.rel (%p795) target = $region56
      $region55: #{tpu_custom_call.1} parent=5 // pred_region
        %s798 = ssub.s32 %s21, 2
        // Predicated region
        $region57: #{tpu_custom_call.1} parent=55 // pred_check
          %p799 = pneg %p134
        $region58: #{tpu_custom_call.1} parent=55 // pred_check_branch
          %801 = sbr.rel (%p799) target = $region60
        $region59: #{tpu_custom_call.1} parent=55 // pred_region
          %s802 = sand.u32 %s119, 1
          %s803 = scalar_lea.sflag [#allocation4], %s802
          %s804 = sand.u32 %s119, 1
          %s805 = smul.addr %s804, 16
          %s806 = scalar_lea.vmem [#allocation8], %s805
          %807 = dma.done %s803, 256
        $region60: #{tpu_custom_call.1} parent=55 // pred_fallthru
          _
        // Predicated region
        $region61: #{tpu_custom_call.1} parent=55 // pred_check
          %p808 = pneg %p162
        $region62: #{tpu_custom_call.1} parent=55 // pred_check_branch
          %810 = sbr.rel (%p808) target = $region64
        $region63: #{tpu_custom_call.1} parent=55 // pred_region
          %s811 = sand.u32 %s147, 1
          %s812 = scalar_lea.sflag [#allocation10], %s811
          %s813 = sand.u32 %s147, 1
          %s814 = smul.addr %s813, 32
          %s815 = scalar_lea.vmem [#allocation9], %s814
          %816 = dma.done %s812, 512
        $region64: #{tpu_custom_call.1} parent=55 // pred_fallthru
          _
      $region56: #{tpu_custom_call.1} parent=5 // pred_fallthru
        _
    $region6: #{tpu_custom_call.1} parent=1 // loop_footer
      %s25 = sadd.s32 1, %s21
    $region7: #{tpu_custom_call.1} parent=1 // loop_footer_branch
      %20 = sbr.rel target = $region3
    $region8: #{tpu_custom_call.1} parent=1 // loop_exit
      _
    %817 = vsyncpa [#allocation3], 1
    %s818 = scalar_lea.sflag [#allocation3], 1
    %819 = vsyncpa %s818, 1
    %820 = vsyncpa [#allocation6], 1
    %821 = vsyncpa [#allocation4], 1
    %s822 = scalar_lea.sflag [#allocation4], 1
    %823 = vsyncpa %s822, 1
    %824 = vsyncpa [#allocation10], 1
    %s825 = scalar_lea.sflag [#allocation10], 1
    %826 = vsyncpa %s825, 1

</llo_original>
